<compile_context>
chip_gen: v7x
topology: tpu7x:2x2x1
jax: 0.10.0
libtpu: 0.0.40
codegen_flags: <defaults>
</compile_context>

<pallas_src>
import math
from typing import NamedTuple

import jax
import jax.numpy as jnp
from jax.experimental import pallas as pl
from jax.experimental.pallas import tpu as pltpu


# ----------------------------------------------------------------------------
# Kernel
# ----------------------------------------------------------------------------
def ffn_kernel(x_ref, w1_ref, b1_ref, w2_ref, b2_ref, o_ref, acc_ref):
    # x_ref : (tm, dm_p)  bf16        w1_ref: (dm_p, tf) bf16
    # b1_ref: (1, df_p)   f32 (full row, resident)
    # w2_ref: (tf, dm_p)  bf16        b2_ref: (1, dm_p)  f32 (resident)
    # o_ref : (tm, dm_p)  orig dtype  acc_ref: (tm, dm_p) f32 scratch
    k = pl.program_id(1)
    tf = w1_ref.shape[1]

    @pl.when(k == 0)
    def _():
        acc_ref[...] = jnp.zeros_like(acc_ref)

    # First matmul for this d_ff slab, bias, ReLU.  f32 accumulation on MXU.
    h = jnp.dot(x_ref[...], w1_ref[...], preferred_element_type=jnp.float32)
    off = pl.multiple_of(k * tf, 128)
    h = jnp.maximum(h + b1_ref[:, pl.ds(off, tf)], 0.0)
    # dropout == identity (eval mode)

    # Second matmul: accumulate this slab's contribution to the output tile.
    acc_ref[...] += jnp.dot(h.astype(w2_ref.dtype), w2_ref[...],
                            preferred_element_type=jnp.float32)

    @pl.when(k == pl.num_programs(1) - 1)
    def _():
        o_ref[...] = (acc_ref[...] + b2_ref[...]).astype(o_ref.dtype)


# ----------------------------------------------------------------------------
# Tiling plan (generation-aware via VMEM capacity)
# ----------------------------------------------------------------------------
class FFNPlan(NamedTuple):
    d_model: int
    d_ff: int
    dm_p: int
    df_p: int
    tm: int
    tf: int
    vmem_limit: int


def _round_up(x, m):
    return (x + m - 1) // m * m


def _vmem_budget():
    cap = 64 << 20  # conservative fallback: v7x per-TensorCore VMEM
    try:
        cap = int(pltpu.get_tpu_info().vmem_capacity_bytes)
    except Exception:
        pass
    # ~20% headroom for compiler-internal scratch: ~51 MiB on v7x (64 MiB),
    # ~102 MiB on v5e/v6e (128 MiB).
    return int(cap * 0.8)


def _footprint(tm, tf, dm_p, df_p, out_itemsize):
    return (
        2 * tm * dm_p * 2            # x tile (bf16, double-buffered)
        + 2 * dm_p * tf * 2          # W1 slab (bf16, double-buffered)
        + 2 * tf * dm_p * 2          # W2 slab (bf16, double-buffered)
        + df_p * 4 + dm_p * 4        # b1 + b2 resident (f32)
        + 2 * tm * dm_p * out_itemsize   # out tile (double-buffered)
        + tm * dm_p * 4              # f32 accumulator scratch
        + tm * tf * 4                # h intermediate (f32)
    )


def make_plan(M, d_model, d_ff, out_dtype):
    budget = _vmem_budget()
    out_itemsize = jnp.dtype(out_dtype).itemsize
    dm_p = _round_up(d_model, 128)
    df_p = _round_up(d_ff, 128)

    # Row tile: big enough to be MXU-bound on weight streaming; always leave
    # >= 2 row tiles (when M > 8) so both TensorCores get work.
    tm_cap = 1024 if budget >= (80 << 20) else 512
    tm = min(tm_cap, _round_up(M, 8))
    if M > 8:
        tm = min(tm, _round_up((M + 1) // 2, 8))

    # d_ff slab: largest multiple of 128 that divides df_p exactly (no wasted
    # zero columns) and fits the VMEM budget; shrink tm if nothing fits.
    tf_candidates = [t for t in range(min(df_p, 2048), 0, -128) if df_p % t == 0]
    while True:
        tf = next((t for t in tf_candidates
                   if _footprint(tm, t, dm_p, df_p, out_itemsize) <= budget), None)
        if tf is not None or tm <= 8:
            tf = tf if tf is not None else 128
            break
        tm = max(8, _round_up(tm // 2, 8))

    fp = _footprint(tm, tf, dm_p, df_p, out_itemsize)
    vmem_limit = min(budget, max(int(fp * 1.25), 16 << 20))
    return FFNPlan(d_model, d_ff, dm_p, df_p, tm, tf, vmem_limit)


# ----------------------------------------------------------------------------
# Parameter prep (done ONCE, hoisted out of the forward path)
# ----------------------------------------------------------------------------
def prepare_params(plan, w1, b1, w2, b2):
    """Cast weights to bf16 and zero-pad to the plan's lane-dense geometry."""
    w1p = jnp.pad(w1.astype(jnp.bfloat16),
                  ((0, plan.dm_p - plan.d_model), (0, plan.df_p - plan.d_ff)))
    w2p = jnp.pad(w2.astype(jnp.bfloat16),
                  ((0, plan.df_p - plan.d_ff), (0, plan.dm_p - plan.d_model)))
    b1p = jnp.pad(b1.astype(jnp.float32),
                  (0, plan.df_p - plan.d_ff)).reshape(1, plan.df_p)
    b2p = jnp.pad(b2.astype(jnp.float32),
                  (0, plan.dm_p - plan.d_model)).reshape(1, plan.dm_p)
    return w1p, b1p, w2p, b2p


# ----------------------------------------------------------------------------
# Forward
# ----------------------------------------------------------------------------
def feed_forward_block(x, prepared, plan):
    """x: (batch, seq, d_model) -> (batch, seq, d_model) in x.dtype."""
    w1p, b1p, w2p, b2p = prepared
    orig_dtype = x.dtype
    batch, seq, d_model = x.shape
    assert d_model == plan.d_model
    M = batch * seq

    tm, tf, dm_p, df_p = plan.tm, plan.tf, plan.dm_p, plan.df_p
    M_p = _round_up(M, tm)
    needs_pad = (M_p != M) or (dm_p != d_model)

    x2 = x.reshape(M, d_model).astype(jnp.bfloat16)
    if needs_pad:
        x2 = jnp.pad(x2, ((0, M_p - M), (0, dm_p - d_model)))

    grid = (M_p // tm, df_p // tf)

    out = pl.pallas_call(
        ffn_kernel,
        out_shape=jax.ShapeDtypeStruct((M_p, dm_p), orig_dtype),
        grid_spec=pltpu.PrefetchScalarGridSpec(
            num_scalar_prefetch=0,
            grid=grid,
            in_specs=[
                pl.BlockSpec((tm, dm_p), lambda i, k: (i, 0)),   # x row tile
                pl.BlockSpec((dm_p, tf), lambda i, k: (0, k)),   # W1 slab
                pl.BlockSpec((1, df_p),  lambda i, k: (0, 0)),   # b1 (resident)
                pl.BlockSpec((tf, dm_p), lambda i, k: (k, 0)),   # W2 slab
                pl.BlockSpec((1, dm_p),  lambda i, k: (0, 0)),   # b2 (resident)
            ],
            out_specs=pl.BlockSpec((tm, dm_p), lambda i, k: (i, 0)),
            scratch_shapes=[pltpu.VMEM((tm, dm_p), jnp.float32)],
        ),
        compiler_params=pltpu.CompilerParams(
            dimension_semantics=("parallel", "arbitrary"),
            vmem_limit_bytes=plan.vmem_limit,
        ),
    )(x2, w1p, b1p, w2p, b2p)

    if needs_pad:
        out = out[:M, :d_model]
    return out.reshape(batch, seq, d_model)


# ----------------------------------------------------------------------------
# Init (mimics torch.nn.Linear default U(-1/sqrt(fan_in), +1/sqrt(fan_in)))
# ----------------------------------------------------------------------------
def init_params(key, d_model, d_ff):
    k1, k2, k3, k4 = jax.random.split(key, 4)
    bound1 = 1.0 / math.sqrt(d_model)
    bound2 = 1.0 / math.sqrt(d_ff)
    # Weights stored as (in_features, out_features) so the kernel does x @ W.
    w1 = jax.random.uniform(k1, (d_model, d_ff), jnp.float32, -bound1, bound1)
    b1 = jax.random.uniform(k2, (d_ff,), jnp.float32, -bound1, bound1)
    w2 = jax.random.uniform(k3, (d_ff, d_model), jnp.float32, -bound2, bound2)
    b2 = jax.random.uniform(k4, (d_model,), jnp.float32, -bound2, bound2)
    return w1, b1, w2, b2


if __name__ == "__main__":
    batch, seq, d_model, d_ff = 2, 8, 32, 64
    key = jax.random.PRNGKey(0)
    kx, kp = jax.random.split(key)

    x = jax.random.normal(kx, (batch, seq, d_model), jnp.float32)
    w1, b1, w2, b2 = init_params(kp, d_model, d_ff)

    plan = make_plan(batch * seq, d_model, d_ff, x.dtype)
    prepared = prepare_params(plan, w1, b1, w2, b2)   # hoisted, done once

    out = feed_forward_block(x, prepared, plan)
    out = jax.block_until_ready(out)

    # Pure-JAX reference in matching bf16-operand / f32-accumulate precision.
    xb = x.astype(jnp.bfloat16).astype(jnp.float32)
    w1b = w1.astype(jnp.bfloat16).astype(jnp.float32)
    w2b = w2.astype(jnp.bfloat16).astype(jnp.float32)
    h_ref = jnp.maximum(xb @ w1b + b1, 0.0)
    ref = h_ref.astype(jnp.bfloat16).astype(jnp.float32) @ w2b + b2

    assert out.shape == (batch, seq, d_model)
    assert jnp.allclose(out, ref, atol=2e-2, rtol=2e-2), (
        float(jnp.max(jnp.abs(out - ref))))

    print("KERNEL_OK")
</pallas_src>

<mosaic_0001>
module attributes {stable_mosaic.version = 11 : i64} {
  func.func @ffn_kernel(%arg0: i32, %arg1: i32, %arg2: memref<8x128xbf16, #tpu.memory_space<vmem>>, %arg3: memref<128x128xbf16, #tpu.memory_space<vmem>>, %arg4: memref<1x128xf32, #tpu.memory_space<vmem>>, %arg5: memref<128x128xbf16, #tpu.memory_space<vmem>>, %arg6: memref<1x128xf32, #tpu.memory_space<vmem>>, %arg7: memref<8x128xf32, #tpu.memory_space<vmem>>, %arg8: memref<8x128xf32, #tpu.memory_space<vmem>>) attributes {dimension_semantics = [#tpu.dimension_semantics<parallel>, #tpu.dimension_semantics<arbitrary>], iteration_bounds = array<i64: 2, 1>, scalar_prefetch = 0 : i64, scratch_operands = 1 : i64, tpu.core_type = #tpu.core_type<tc>, window_params = [{transform_indices = @transform_0, window_bounds = array<i64: 8, 128>}, {transform_indices = @transform_1, window_bounds = array<i64: 128, 128>}, {pipeline_mode = #tpu.pipeline_mode<synchronous>, transform_indices = @transform_2, window_bounds = array<i64: 1, 128>}, {transform_indices = @transform_3, window_bounds = array<i64: 128, 128>}, {pipeline_mode = #tpu.pipeline_mode<synchronous>, transform_indices = @transform_4, window_bounds = array<i64: 1, 128>}, {transform_indices = @transform_5, window_bounds = array<i64: 8, 128>}]} {
    %c0_i32 = arith.constant 0 : i32
    %0 = arith.cmpi eq, %arg1, %c0_i32 : i32
    %1 = arith.extui %0 : i1 to i32
    %c0_i32_0 = arith.constant 0 : i32
    %2 = arith.cmpi ne, %1, %c0_i32_0 : i32
    scf.if %2 {
      %cst_15 = arith.constant 0.000000e+00 : f32
      %23 = vector.broadcast %cst_15 : f32 to vector<8x128xf32>
      %c0_16 = arith.constant 0 : index
      %c0_17 = arith.constant 0 : index
      %24 = vector.load %arg8[%c0_16, %c0_17] : memref<8x128xf32, #tpu.memory_space<vmem>>, vector<8x128xf32>
      tpu.vector_store %arg8[%c0_16, %c0_17], %23 {strides = array<i32>} : memref<8x128xf32, #tpu.memory_space<vmem>>, vector<8x128xf32>,
    } else {
    }
    %c0 = arith.constant 0 : index
    %c0_1 = arith.constant 0 : index
    %3 = vector.load %arg2[%c0, %c0_1] : memref<8x128xbf16, #tpu.memory_space<vmem>>, vector<8x128xbf16>
    %c0_2 = arith.constant 0 : index
    %c0_3 = arith.constant 0 : index
    %4 = vector.load %arg3[%c0_2, %c0_3] : memref<128x128xbf16, #tpu.memory_space<vmem>>, vector<128x128xbf16>
    %cst = arith.constant dense<0.000000e+00> : vector<8x128xf32>
    %5 = tpu.matmul %3, %4, %cst {dimension_numbers = #tpu.dot_dimension_numbers<[1], [0], [0], [1], [0, 0, 1, 1], [], []>} : vector<8x128xbf16>, vector<128x128xbf16>, vector<8x128xf32> -> vector<8x128xf32>
    %c128_i32 = arith.constant 128 : i32
    %6 = arith.muli %arg1, %c128_i32 : i32
    %7 = tpu.assume_multiple %6, 128 : i32
    %c0_4 = arith.constant 0 : index
    %8 = arith.index_cast %7 : i32 to index
    %9 = vector.load %arg4[%c0_4, %8] : memref<1x128xf32, #tpu.memory_space<vmem>>, vector<1x128xf32>
    %10 = vector.broadcast %9 : vector<1x128xf32> to vector<8x128xf32>
    %11 = arith.addf %5, %10 : vector<8x128xf32>
    %cst_5 = arith.constant 0.000000e+00 : f32
    %12 = vector.broadcast %cst_5 : f32 to vector<8x128xf32>
    %13 = arith.maximumf %11, %12 : vector<8x128xf32>
    %c0_6 = arith.constant 0 : index
    %c0_7 = arith.constant 0 : index
    %14 = vector.load %arg8[%c0_6, %c0_7] : memref<8x128xf32, #tpu.memory_space<vmem>>, vector<8x128xf32>
    %15 = arith.truncf %13 : vector<8x128xf32> to vector<8x128xbf16>
    %c0_8 = arith.constant 0 : index
    %c0_9 = arith.constant 0 : index
    %16 = vector.load %arg5[%c0_8, %c0_9] : memref<128x128xbf16, #tpu.memory_space<vmem>>, vector<128x128xbf16>
    %cst_10 = arith.constant dense<0.000000e+00> : vector<8x128xf32>
    %17 = tpu.matmul %15, %16, %cst_10 {dimension_numbers = #tpu.dot_dimension_numbers<[1], [0], [0], [1], [0, 0, 1, 1], [], []>} : vector<8x128xbf16>, vector<128x128xbf16>, vector<8x128xf32> -> vector<8x128xf32>
    %18 = arith.addf %14, %17 : vector<8x128xf32>
    %c0_11 = arith.constant 0 : index
    %c0_12 = arith.constant 0 : index
    %19 = vector.load %arg8[%c0_11, %c0_12] : memref<8x128xf32, #tpu.memory_space<vmem>>, vector<8x128xf32>
    tpu.vector_store %arg8[%c0_11, %c0_12], %18 {strides = array<i32>} : memref<8x128xf32, #tpu.memory_space<vmem>>, vector<8x128xf32>,
    %c0_i32_13 = arith.constant 0 : i32
    %20 = arith.cmpi eq, %arg1, %c0_i32_13 : i32
    %21 = arith.extui %20 : i1 to i32
    %c0_i32_14 = arith.constant 0 : i32
    %22 = arith.cmpi ne, %21, %c0_i32_14 : i32
    scf.if %22 {
      %c0_15 = arith.constant 0 : index
      %c0_16 = arith.constant 0 : index
      %23 = vector.load %arg8[%c0_15, %c0_16] : memref<8x128xf32, #tpu.memory_space<vmem>>, vector<8x128xf32>
      %c0_17 = arith.constant 0 : index
      %c0_18 = arith.constant 0 : index
      %24 = vector.load %arg6[%c0_17, %c0_18] : memref<1x128xf32, #tpu.memory_space<vmem>>, vector<1x128xf32>
      %25 = vector.broadcast %24 : vector<1x128xf32> to vector<8x128xf32>
      %26 = arith.addf %23, %25 : vector<8x128xf32>
      %c0_19 = arith.constant 0 : index
      %c0_20 = arith.constant 0 : index
      %27 = vector.load %arg7[%c0_19, %c0_20] : memref<8x128xf32, #tpu.memory_space<vmem>>, vector<8x128xf32>
      tpu.vector_store %arg7[%c0_19, %c0_20], %26 {strides = array<i32>} : memref<8x128xf32, #tpu.memory_space<vmem>>, vector<8x128xf32>,
    } else {
    }
    return
  }
  func.func @transform_0(%arg0: i32, %arg1: i32) -> (i32, i32) {
    %c0_i32 = arith.constant 0 : i32
    %c0_i32_0 = arith.constant 0 : i32
    return %arg0, %c0_i32 : i32, i32
  }
  func.func @transform_1(%arg0: i32, %arg1: i32) -> (i32, i32) {
    %c0_i32 = arith.constant 0 : i32
    %c0_i32_0 = arith.constant 0 : i32
    return %c0_i32, %arg1 : i32, i32
  }
  func.func @transform_2(%arg0: i32, %arg1: i32) -> (i32, i32) {
    %c0_i32 = arith.constant 0 : i32
    %c0_i32_0 = arith.constant 0 : i32
    %c0_i32_1 = arith.constant 0 : i32
    return %c0_i32, %c0_i32_0 : i32, i32
  }
  func.func @transform_3(%arg0: i32, %arg1: i32) -> (i32, i32) {
    %c0_i32 = arith.constant 0 : i32
    %c0_i32_0 = arith.constant 0 : i32
    return %arg1, %c0_i32 : i32, i32
  }
  func.func @transform_4(%arg0: i32, %arg1: i32) -> (i32, i32) {
    %c0_i32 = arith.constant 0 : i32
    %c0_i32_0 = arith.constant 0 : i32
    %c0_i32_1 = arith.constant 0 : i32
    return %c0_i32, %c0_i32_0 : i32, i32
  }
  func.func @transform_5(%arg0: i32, %arg1: i32) -> (i32, i32) {
    %c0_i32 = arith.constant 0 : i32
    %c0_i32_0 = arith.constant 0 : i32
    return %arg0, %c0_i32 : i32, i32
  }
}

</mosaic_0001>

<llo_original>
// kernel: tpu_custom_call.1
$region0: #{tpu_custom_call.1}
  #allocation0 [shape = 'u32[]', space=smem, size = 0x4, offset = 0x4, fixed_abs, tag = 'smem constant byte address 0x4 - core index']
  #allocation1 [shape = 'u32[144,128]{1,0:T(1,128)}', space=vmem, size = 0x12000, scoped, tag = 'internal scratch']
  #allocation2 [shape = 'f32[8,128]{1,0:T(8,128)}', space=vmem, size = 0x1000, scoped, tag = 'scratch operand']
  %s0 = inlined_call_operand.hbm [shape: bf16[16,128], index: 0, kind: input, shape index: {}]
  %s1 = inlined_call_operand.hbm [shape: bf16[128,128], index: 1, kind: input, shape index: {}]
  %s2 = inlined_call_operand.vmem [shape: f32[1,128], index: 2, kind: input, shape index: {}]
  %s3 = inlined_call_operand.hbm [shape: bf16[128,128], index: 3, kind: input, shape index: {}]
  %s4 = inlined_call_operand.vmem [shape: f32[1,128], index: 4, kind: input, shape index: {}]
  %s5 = inlined_call_operand.hbm [shape: f32[16,128], index: 5, kind: output, shape index: {}]
  %s6 = sld [smem:[#allocation0]]
  $region73: #{tpu_custom_call.1} parent=0
    _
  %s8 = ssub.s32 1, %s6
  %s9 = scalar_select 0, %s8, %s6
  $region1: #{tpu_custom_call.1} parent=0
    #allocation3 [shape = 'u8[4096]{0}', space=vmem, size = 0x1000, scoped, tag = 'input window, operand 0']
    #allocation4 [shape = 's32[2]{0}', space=sflag, size = 0x8, scoped, tag = 'scoped memory for tpu_custom_call.1']
    #allocation5 [shape = 's32[2]{0}', space=sflag, size = 0x8, scoped, tag = 'scoped memory for tpu_custom_call.1']
    #allocation6 [shape = 'u8[32768]{0}', space=vmem, size = 0x8000, scoped, tag = 'input window, operand 1, single buffered']
    #allocation7 [shape = 's32[1]{0}', space=sflag, size = 0x4, scoped, tag = 'scoped memory for tpu_custom_call.1']
    #allocation8 [shape = 'u8[32768]{0}', space=vmem, size = 0x8000, scoped, tag = 'input window, operand 3, single buffered']
    #allocation9 [shape = 'u8[8192]{0}', space=vmem, size = 0x2000, scoped, tag = 'output window, operand 0']
    %10 = vsyncpa [#allocation4], 0
    %s11 = scalar_lea.sflag [#allocation4], 1
    %12 = vsyncpa %s11, 0
    %13 = vsyncpa [#allocation7], 0
    %14 = vsyncpa [#allocation5], 0
    %s15 = scalar_lea.sflag [#allocation5], 1
    %16 = vsyncpa %s15, 0
    loop: start=0, step=1, limit=4
    $region2: #{tpu_custom_call.1} parent=1 // loop_pre_header
      _
    $region3: #{tpu_custom_call.1} parent=1 // loop_header
      %s18 = sphi 0, %s22
      %p19 = scmp.ge.s32.totalorder %s18, 4
      %s25 = sphi 0, %s37
      %s26 = sphi 0, %s33
      %s27 = sphi 0, %s25
      %s28 = sphi 0, %s26
      %s29 = sphi 0, %s27
      %s30 = sphi 0, %s28
      %s40 = sphi 0, %s42
      %s43 = sphi 0, %s40
      %s44 = sphi 0, %s43
      %s60 = sphi 0, %s44
      %s66 = sphi 0, %s68
      %s69 = sphi 0, %s66
      %s70 = sphi 0, %s69
      %s86 = sphi 0, %s70
      %s90 = sphi 0, %s90
      %s92 = sphi 0, %s90
      %s93 = sphi 0, %s92
      %s107 = sphi 0, %s93
      %s113 = sphi 0, %s115
      %s116 = sphi 0, %s113
      %s117 = sphi 0, %s116
      %s133 = sphi 0, %s117
      %s137 = sphi 0, %s137
      %s139 = sphi 0, %s137
      %s140 = sphi 0, %s139
      %s154 = sphi 0, %s140
      %s160 = sphi 0, %s162
      %s163 = sphi 0, %s160
      %s164 = sphi 0, %s163
      %s180 = sphi 0, %s164
    $region4: #{tpu_custom_call.1} parent=1 // loop_header_branch
      %21 = sbr.rel (%p19) target = $region8
    $region5: #{tpu_custom_call.1} parent=1 // loop_body
      %s23 = ssub.s32 %s18, 1
      %s24 = ssub.s32 %s18, 2
      %s31 = sadd.s32 1, %s26
      %p32 = scmp.ge.s32.totalorder %s31, 1
      %s33 = scalar_select %p32, 0, %s31
      %s34 = sadd.s32 1, %s25
      %s35 = scalar_select %p32, %s34, %s25
      %p36 = scmp.ge.s32.totalorder %s35, 2
      %s37 = scalar_select %p36, 0, %s35
      %s38 = ssub.s32 %s25, %s37
      %p39 = scmp.eq.s32.totalorder %s38, 0
      %s41 = sadd.s32 %s40, 1
      %s42 = scalar_select %p39, %s40, %s41
      %p45 = pneg %p39
      %p46 = scmp.eq.s32.totalorder %s18, 1
      %p47 = por %p45, %p46
      %p48 = scmp.ne.s32.totalorder %s40, %s43
      %p49 = scmp.eq.s32.totalorder %s18, 0
      %p50 = por %p48, %p49
      %p51 = scmp.ne.s32.totalorder %s40, %s43
      %p52 = scmp.eq.s32.totalorder %s23, 1
      %p53 = por %p51, %p52
      %p54 = scmp.ne.s32.totalorder %s43, %s44
      %p55 = scmp.eq.s32.totalorder %s23, 0
      %p56 = por %p54, %p55
      %p57 = scmp.ne.s32.totalorder %s43, %s44
      %p58 = scmp.eq.s32.totalorder %s24, 1
      %p59 = por %p57, %p58
      %p61 = scmp.ne.s32.totalorder %s44, %s60
      %p62 = scmp.eq.s32.totalorder %s24, 0
      %p63 = por %p61, %p62
      %s64 = ssub.s32 %s26, %s33
      %p65 = scmp.eq.s32.totalorder %s64, 0
      %s67 = sadd.s32 %s66, 1
      %s68 = scalar_select %p65, %s66, %s67
      %p71 = pneg %p65
      %p72 = scmp.eq.s32.totalorder %s18, 1
      %p73 = por %p71, %p72
      %p74 = scmp.ne.s32.totalorder %s66, %s69
      %p75 = scmp.eq.s32.totalorder %s18, 0
      %p76 = por %p74, %p75
      %p77 = scmp.ne.s32.totalorder %s66, %s69
      %p78 = scmp.eq.s32.totalorder %s23, 1
      %p79 = por %p77, %p78
      %p80 = scmp.ne.s32.totalorder %s69, %s70
      %p81 = scmp.eq.s32.totalorder %s23, 0
      %p82 = por %p80, %p81
      %p83 = scmp.ne.s32.totalorder %s69, %s70
      %p84 = scmp.eq.s32.totalorder %s24, 1
      %p85 = por %p83, %p84
      %p87 = scmp.ne.s32.totalorder %s70, %s86
      %p88 = scmp.eq.s32.totalorder %s24, 0
      %p89 = por %p87, %p88
      %s91 = sadd.s32 %s90, 1
      %p94 = scmp.eq.s32.totalorder %s18, 1
      %p95 = scmp.ne.s32.totalorder %s90, %s92
      %p96 = scmp.eq.s32.totalorder %s18, 0
      %p97 = por %p95, %p96
      %p98 = scmp.ne.s32.totalorder %s90, %s92
      %p99 = scmp.eq.s32.totalorder %s23, 1
      %p100 = por %p98, %p99
      %p101 = scmp.ne.s32.totalorder %s92, %s93
      %p102 = scmp.eq.s32.totalorder %s23, 0
      %p103 = por %p101, %p102
      %p104 = scmp.ne.s32.totalorder %s92, %s93
      %p105 = scmp.eq.s32.totalorder %s24, 1
      %p106 = por %p104, %p105
      %p108 = scmp.ne.s32.totalorder %s93, %s107
      %p109 = scmp.eq.s32.totalorder %s24, 0
      %p110 = por %p108, %p109
      %s111 = ssub.s32 %s26, %s33
      %p112 = scmp.eq.s32.totalorder %s111, 0
      %s114 = sadd.s32 %s113, 1
      %s115 = scalar_select %p112, %s113, %s114
      %p118 = pneg %p112
      %p119 = scmp.eq.s32.totalorder %s18, 1
      %p120 = por %p118, %p119
      %p121 = scmp.ne.s32.totalorder %s113, %s116
      %p122 = scmp.eq.s32.totalorder %s18, 0
      %p123 = por %p121, %p122
      %p124 = scmp.ne.s32.totalorder %s113, %s116
      %p125 = scmp.eq.s32.totalorder %s23, 1
      %p126 = por %p124, %p125
      %p127 = scmp.ne.s32.totalorder %s116, %s117
      %p128 = scmp.eq.s32.totalorder %s23, 0
      %p129 = por %p127, %p128
      %p130 = scmp.ne.s32.totalorder %s116, %s117
      %p131 = scmp.eq.s32.totalorder %s24, 1
      %p132 = por %p130, %p131
      %p134 = scmp.ne.s32.totalorder %s117, %s133
      %p135 = scmp.eq.s32.totalorder %s24, 0
      %p136 = por %p134, %p135
      %s138 = sadd.s32 %s137, 1
      %p141 = scmp.eq.s32.totalorder %s18, 1
      %p142 = scmp.ne.s32.totalorder %s137, %s139
      %p143 = scmp.eq.s32.totalorder %s18, 0
      %p144 = por %p142, %p143
      %p145 = scmp.ne.s32.totalorder %s137, %s139
      %p146 = scmp.eq.s32.totalorder %s23, 1
      %p147 = por %p145, %p146
      %p148 = scmp.ne.s32.totalorder %s139, %s140
      %p149 = scmp.eq.s32.totalorder %s23, 0
      %p150 = por %p148, %p149
      %p151 = scmp.ne.s32.totalorder %s139, %s140
      %p152 = scmp.eq.s32.totalorder %s24, 1
      %p153 = por %p151, %p152
      %p155 = scmp.ne.s32.totalorder %s140, %s154
      %p156 = scmp.eq.s32.totalorder %s24, 0
      %p157 = por %p155, %p156
      %s158 = ssub.s32 %s25, %s37
      %p159 = scmp.eq.s32.totalorder %s158, 0
      %s161 = sadd.s32 %s160, 1
      %s162 = scalar_select %p159, %s160, %s161
      %p165 = pneg %p159
      %p166 = scmp.eq.s32.totalorder %s18, 1
      %p167 = por %p165, %p166
      %p168 = scmp.ne.s32.totalorder %s160, %s163
      %p169 = scmp.eq.s32.totalorder %s18, 0
      %p170 = por %p168, %p169
      %p171 = scmp.ne.s32.totalorder %s160, %s163
      %p172 = scmp.eq.s32.totalorder %s23, 1
      %p173 = por %p171, %p172
      %p174 = scmp.ne.s32.totalorder %s163, %s164
      %p175 = scmp.eq.s32.totalorder %s23, 0
      %p176 = por %p174, %p175
      %p177 = scmp.ne.s32.totalorder %s163, %s164
      %p178 = scmp.eq.s32.totalorder %s24, 1
      %p179 = por %p177, %p178
      %p181 = scmp.ne.s32.totalorder %s164, %s180
      %p182 = scmp.eq.s32.totalorder %s24, 0
      %p183 = por %p181, %p182
      %p184 = scmp.le.s32.totalorder 1, %s18
      %p185 = scmp.lt.s32.totalorder %s18, 3
      %p186 = pnand %p184, %p185
      %p187 = pneg %p186
      // Predicated region
      $region9: #{tpu_custom_call.1} parent=5 // pred_check
        _
      $region10: #{tpu_custom_call.1} parent=5 // pred_check_branch
        %189 = sbr.rel (%p186) target = $region12
      $region11: #{tpu_custom_call.1} parent=5 // pred_region
        %s190 = ssub.s32 %s18, 1
        // Predicated region
        $region13: #{tpu_custom_call.1} parent=11 // pred_check
          %p191 = pneg %p82
        $region14: #{tpu_custom_call.1} parent=11 // pred_check_branch
          %193 = sbr.rel (%p191) target = $region16
        $region15: #{tpu_custom_call.1} parent=11 // pred_region
          %s195 = ssub.s32 1024, 1024
          %196 = vsyncadd [#allocation7], %s195
          %s197 = smul.addr %s28, 64
          %s198 = scalar_lea.hbm %s1, %s197
          %s199 = sshll.u32 [#allocation6], 4
          %s200 = int_to_ptr.vmem [resolvable:$true] %s199
          %205 = dma.hbm_to_vmem [thread:$0]  %s198, 1024, %s200, [#allocation7], 64, 64, 4
        $region16: #{tpu_custom_call.1} parent=11 // pred_fallthru
          _
        // Predicated region
        $region17: #{tpu_custom_call.1} parent=11 // pred_check
          %p206 = pneg %p103
        $region18: #{tpu_custom_call.1} parent=11 // pred_check_branch
          %208 = sbr.rel (%p206) target = $region20
        $region19: #{tpu_custom_call.1} parent=11 // pred_region
          _
        $region20: #{tpu_custom_call.1} parent=11 // pred_fallthru
          _
        // Predicated region
        $region21: #{tpu_custom_call.1} parent=11 // pred_check
          %p209 = pneg %p129
        $region22: #{tpu_custom_call.1} parent=11 // pred_check_branch
          %211 = sbr.rel (%p209) target = $region24
        $region23: #{tpu_custom_call.1} parent=11 // pred_region
          %s212 = smul.u32 16, %s28
          %s214 = ssub.s32 1024, 1024
          %215 = vsyncadd [#allocation7], %s214
          %s216 = smul.addr %s212, 64
          %s217 = scalar_lea.hbm %s3, %s216
          %s218 = sshll.u32 [#allocation8], 4
          %s219 = int_to_ptr.vmem [resolvable:$true] %s218
          %224 = dma.hbm_to_vmem [thread:$0]  %s217, 1024, %s219, [#allocation7], 64, 64, 4
        $region24: #{tpu_custom_call.1} parent=11 // pred_fallthru
          _
        // Predicated region
        $region25: #{tpu_custom_call.1} parent=11 // pred_check
          %p225 = pneg %p150
        $region26: #{tpu_custom_call.1} parent=11 // pred_check_branch
          %227 = sbr.rel (%p225) target = $region28
        $region27: #{tpu_custom_call.1} parent=11 // pred_region
          _
        $region28: #{tpu_custom_call.1} parent=11 // pred_fallthru
          _
      $region12: #{tpu_custom_call.1} parent=5 // pred_fallthru
        _
      %p228 = scmp.lt.s32.totalorder %s18, 2
      // Predicated region
      $region29: #{tpu_custom_call.1} parent=5 // pred_check
        %p229 = pneg %p228
      $region30: #{tpu_custom_call.1} parent=5 // pred_check_branch
        %231 = sbr.rel (%p229) target = $region32
      $region31: #{tpu_custom_call.1} parent=5 // pred_region
        // Predicated region
        $region33: #{tpu_custom_call.1} parent=31 // pred_check
          %p232 = pneg %p50
        $region34: #{tpu_custom_call.1} parent=31 // pred_check_branch
          %234 = sbr.rel (%p232) target = $region36
        $region35: #{tpu_custom_call.1} parent=31 // pred_region
          %s235 = sand.u32 %s40, 1
          %s236 = scalar_lea.sflag [#allocation4], %s235
          %s237 = sand.u32 %s40, 1
          %s238 = smul.addr %s237, 4
          %s239 = scalar_lea.vmem [#allocation3], %s238
          %s241 = ssub.s32 64, 64
          %242 = vsyncadd %s236, %s241
          %s243 = smul.addr %s25, 64
          %s244 = scalar_lea.hbm %s0, %s243
          %s246 = sshll.u32 %s239, 4
          %s247 = int_to_ptr.vmem [resolvable:$true] %s246
          %249 = dma.hbm_to_vmem [thread:$0]  %s244, 64, %s247, %s236
        $region36: #{tpu_custom_call.1} parent=31 // pred_fallthru
          _
      $region32: #{tpu_custom_call.1} parent=5 // pred_fallthru
        _
      %p250 = scmp.le.s32.totalorder 1, %s18
      %p251 = scmp.lt.s32.totalorder %s18, 3
      %p252 = pnand %p250, %p251
      %p253 = pneg %p252
      // Predicated region
      $region37: #{tpu_custom_call.1} parent=5 // pred_check
        _
      $region38: #{tpu_custom_call.1} parent=5 // pred_check_branch
        %255 = sbr.rel (%p252) target = $region40
      $region39: #{tpu_custom_call.1} parent=5 // pred_region
        %s256 = ssub.s32 %s18, 1
        %s257 = sand.u32 %s43, 1
        %s258 = scalar_lea.sflag [#allocation4], %s257
        %s259 = sand.u32 %s43, 1
        %s260 = smul.addr %s259, 4
        %s261 = scalar_lea.vmem [#allocation3], %s260
        // Predicated region
        $region41: #{tpu_custom_call.1} parent=39 // pred_check
          %p262 = pneg %p56
        $region42: #{tpu_custom_call.1} parent=39 // pred_check_branch
          %264 = sbr.rel (%p262) target = $region44
        $region43: #{tpu_custom_call.1} parent=39 // pred_region
          %265 = dma.done %s258, 64
        $region44: #{tpu_custom_call.1} parent=39 // pred_fallthru
          _
        // Predicated region
        $region45: #{tpu_custom_call.1} parent=39 // pred_check
          %p266 = pneg %p82
        $region46: #{tpu_custom_call.1} parent=39 // pred_check_branch
          %268 = sbr.rel (%p266) target = $region48
        $region47: #{tpu_custom_call.1} parent=39 // pred_region
          %269 = dma.done [#allocation7], 1024
        $region48: #{tpu_custom_call.1} parent=39 // pred_fallthru
          _
        // Predicated region
        $region49: #{tpu_custom_call.1} parent=39 // pred_check
          %p270 = pneg %p129
        $region50: #{tpu_custom_call.1} parent=39 // pred_check_branch
          %272 = sbr.rel (%p270) target = $region52
        $region51: #{tpu_custom_call.1} parent=39 // pred_region
          %273 = dma.done [#allocation7], 1024
        $region52: #{tpu_custom_call.1} parent=39 // pred_fallthru
          _
        %s274 = sand.u32 %s43, 1
        %s275 = scalar_lea.sflag [#allocation4], %s274
        %s276 = sand.u32 %s43, 1
        %s277 = smul.addr %s276, 4
        %s278 = scalar_lea.vmem [#allocation3], %s277
        %p279 = pneg %p56
        %p280 = pneg %p53
        %p281 = pneg %p82
        %p282 = pneg %p79
        %p283 = pneg %p103
        %p284 = pneg %p100
        %p285 = pneg %p129
        %p286 = pneg %p126
        %p287 = pneg %p150
        %p288 = pneg %p147
        %p289 = pneg %p176
        %p290 = pneg %p173
        %s291 = sand.u32 %s163, 1
        %s292 = scalar_lea.sflag [#allocation5], %s291
        %s293 = sand.u32 %s163, 1
        %s294 = smul.addr %s293, 8
        %s295 = scalar_lea.vmem [#allocation9], %s294
        %s296 = smul.u32 16, %s28
        %p298 = scmp.eq.s32.totalorder %s28, 0
        // Predicated region
        $region53: #{tpu_custom_call.1} parent=39 // pred_check
          %p299 = pneg %p298
        $region54: #{tpu_custom_call.1} parent=39 // pred_check_branch
          %301 = sbr.rel (%p299) target = $region56
        $region55: #{tpu_custom_call.1} parent=39 // pred_region
          %302 = vst [vmem:[#allocation2] sm:$0xff] 0.0
        $region56: #{tpu_custom_call.1} parent=39 // pred_fallthru
          _
        %v303 = vld [vmem:[%s261] sm:$0xf]
        %v304 = vld [vmem:[#allocation6] sm:$0xf]
        %v305 = vld [vmem:[#allocation6 + $0x4] sm:$0xf]
        %v306 = vld [vmem:[#allocation6 + $0x8] sm:$0xf]
        %v307 = vld [vmem:[#allocation6 + $0xc] sm:$0xf]
        %v308 = vld [vmem:[#allocation6 + $0x10] sm:$0xf]
        %v309 = vld [vmem:[#allocation6 + $0x14] sm:$0xf]
        %v310 = vld [vmem:[#allocation6 + $0x18] sm:$0xf]
        %v311 = vld [vmem:[#allocation6 + $0x1c] sm:$0xf]
        %v312 = vld [vmem:[#allocation6 + $0x20] sm:$0xf]
        %v313 = vld [vmem:[#allocation6 + $0x24] sm:$0xf]
        %v314 = vld [vmem:[#allocation6 + $0x28] sm:$0xf]
        %v315 = vld [vmem:[#allocation6 + $0x2c] sm:$0xf]
        %v316 = vld [vmem:[#allocation6 + $0x30] sm:$0xf]
        %v317 = vld [vmem:[#allocation6 + $0x34] sm:$0xf]
        %v318 = vld [vmem:[#allocation6 + $0x38] sm:$0xf]
        %v319 = vld [vmem:[#allocation6 + $0x3c] sm:$0xf]
        %s320 = smul.u32 %s28, 128
        %s321 = sshra.s32 %s320, 7
        %s322 = sand.u32 %s320, 127
        %s323 = scalar_lea.vmem %s2, %s321
        %v324 = vld [vmem:[%s323] sm:$0x1]
        %v326 = vlaneseq
        %v327 = vshrl.u32 %v326, 7
        %v328 = vsub.s32 0, %v327
        %v329 = vrot.slane %v324, %v328
        %v347 = vunpack.c.l.b16 %v304
        %v348 = vunpack.c.l.b16 %v305
        %v349 = vunpack.c.l.b16 %v306
        %v350 = vunpack.c.l.b16 %v307
        %v351 = vunpack.c.l.b16 %v308
        %v352 = vunpack.c.l.b16 %v309
        %v353 = vunpack.c.l.b16 %v310
        %v354 = vunpack.c.l.b16 %v311
        %v355 = vunpack.c.l.b16 %v312
        %v356 = vunpack.c.l.b16 %v313
        %v357 = vunpack.c.l.b16 %v314
        %v358 = vunpack.c.l.b16 %v315
        %v359 = vunpack.c.l.b16 %v316
        %v360 = vunpack.c.l.b16 %v317
        %v361 = vunpack.c.l.b16 %v318
        %v362 = vunpack.c.l.b16 %v319
        %v363 = vpack.c.b16 %v348, %v347
        %v364 = vpack.c.b16 %v350, %v349
        %v365 = vpack.c.b16 %v352, %v351
        %v366 = vpack.c.b16 %v354, %v353
        %v367 = vpack.c.b16 %v356, %v355
        %v368 = vpack.c.b16 %v358, %v357
        %v369 = vpack.c.b16 %v360, %v359
        %v370 = vpack.c.b16 %v362, %v361
        %379 = vmatprep.subr.bf16.mxu0 0
        %380 = vmatpush1.bf16.msra.mxu0 %v363
        %381 = vmatprep.subr.bf16.mxu0 0
        %382 = vmatpush1.bf16.msra.mxu0 %v364
        %383 = vmatprep.subr.bf16.mxu0 0
        %384 = vmatpush1.bf16.msra.mxu0 %v365
        %385 = vmatprep.subr.bf16.mxu0 0
        %386 = vmatpush1.bf16.msra.mxu0 %v366
        %387 = vmatprep.subr.bf16.mxu0 0
        %388 = vmatpush1.bf16.msra.mxu0 %v367
        %389 = vmatprep.subr.bf16.mxu0 0
        %390 = vmatpush1.bf16.msra.mxu0 %v368
        %391 = vmatprep.subr.bf16.mxu0 0
        %392 = vmatpush1.bf16.msra.mxu0 %v369
        %393 = vmatprep.subr.bf16.mxu0 0
        %394 = vmatpush1.bf16.msra.mxu0 %v370
        %395 = vmatprep.subr.bf16.mxu0 0
        %396 = vmatpush1.bf16.msra.mxu0 0
        %397 = vmatprep.subr.bf16.mxu0 0
        %398 = vmatpush1.bf16.msra.mxu0 0
        %399 = vmatprep.subr.bf16.mxu0 0
        %400 = vmatpush1.bf16.msra.mxu0 0
        %401 = vmatprep.subr.bf16.mxu0 0
        %402 = vmatpush1.bf16.msra.mxu0 0
        %403 = vmatprep.subr.bf16.mxu0 0
        %404 = vmatpush1.bf16.msra.mxu0 0
        %405 = vmatprep.subr.bf16.mxu0 0
        %406 = vmatpush1.bf16.msra.mxu0 0
        %407 = vmatprep.subr.bf16.mxu0 0
        %408 = vmatpush1.bf16.msra.mxu0 0
        %409 = vmatprep.subr.bf16.mxu0 0
        %410 = vmatpush1.bf16.msra.mxu0 0
        %411 = vmatprep.mubr.bf16.mxu0 0
        %412 = vmatmul.mubr.bf16.gmra.mrb[0].mxu0 %v303
        %v413 = vpop.f32.mrb[0].mxu0
        %v414 = vadd.f32 %v329, %v413
        %v415 = vpop.f32.mrb[0].mxu0
        %v416 = vpop.f32.mrb[0].mxu0
        %v417 = vpop.f32.mrb[0].mxu0
        %418 = vdwg.mxu0
        %v419 = vmax.f32 %v414, 0.0
        %v420 = vld [vmem:[#allocation2] sm:$0xff]
        %v421 = vpack.c.bf16 %v419, %v419
        %v422 = vld [vmem:[#allocation8] sm:$0xf]
        %v423 = vld [vmem:[#allocation8 + $0x4] sm:$0xf]
        %v424 = vld [vmem:[#allocation8 + $0x8] sm:$0xf]
        %v425 = vld [vmem:[#allocation8 + $0xc] sm:$0xf]
        %v426 = vld [vmem:[#allocation8 + $0x10] sm:$0xf]
        %v427 = vld [vmem:[#allocation8 + $0x14] sm:$0xf]
        %v428 = vld [vmem:[#allocation8 + $0x18] sm:$0xf]
        %v429 = vld [vmem:[#allocation8 + $0x1c] sm:$0xf]
        %v430 = vld [vmem:[#allocation8 + $0x20] sm:$0xf]
        %v431 = vld [vmem:[#allocation8 + $0x24] sm:$0xf]
        %v432 = vld [vmem:[#allocation8 + $0x28] sm:$0xf]
        %v433 = vld [vmem:[#allocation8 + $0x2c] sm:$0xf]
        %v434 = vld [vmem:[#allocation8 + $0x30] sm:$0xf]
        %v435 = vld [vmem:[#allocation8 + $0x34] sm:$0xf]
        %v436 = vld [vmem:[#allocation8 + $0x38] sm:$0xf]
        %v437 = vld [vmem:[#allocation8 + $0x3c] sm:$0xf]
        %v454 = vunpack.c.l.b16 %v422
        %v455 = vunpack.c.l.b16 %v423
        %v456 = vunpack.c.l.b16 %v424
        %v457 = vunpack.c.l.b16 %v425
        %v458 = vunpack.c.l.b16 %v426
        %v459 = vunpack.c.l.b16 %v427
        %v460 = vunpack.c.l.b16 %v428
        %v461 = vunpack.c.l.b16 %v429
        %v462 = vunpack.c.l.b16 %v430
        %v463 = vunpack.c.l.b16 %v431
        %v464 = vunpack.c.l.b16 %v432
        %v465 = vunpack.c.l.b16 %v433
        %v466 = vunpack.c.l.b16 %v434
        %v467 = vunpack.c.l.b16 %v435
        %v468 = vunpack.c.l.b16 %v436
        %v469 = vunpack.c.l.b16 %v437
        %v470 = vpack.c.b16 %v455, %v454
        %v471 = vpack.c.b16 %v457, %v456
        %v472 = vpack.c.b16 %v459, %v458
        %v473 = vpack.c.b16 %v461, %v460
        %v474 = vpack.c.b16 %v463, %v462
        %v475 = vpack.c.b16 %v465, %v464
        %v476 = vpack.c.b16 %v467, %v466
        %v477 = vpack.c.b16 %v469, %v468
        %486 = vmatprep.subr.bf16.mxu0 0
        %487 = vmatpush1.bf16.msra.mxu0 %v470
        %488 = vmatprep.subr.bf16.mxu0 0
        %489 = vmatpush1.bf16.msra.mxu0 %v471
        %490 = vmatprep.subr.bf16.mxu0 0
        %491 = vmatpush1.bf16.msra.mxu0 %v472
        %492 = vmatprep.subr.bf16.mxu0 0
        %493 = vmatpush1.bf16.msra.mxu0 %v473
        %494 = vmatprep.subr.bf16.mxu0 0
        %495 = vmatpush1.bf16.msra.mxu0 %v474
        %496 = vmatprep.subr.bf16.mxu0 0
        %497 = vmatpush1.bf16.msra.mxu0 %v475
        %498 = vmatprep.subr.bf16.mxu0 0
        %499 = vmatpush1.bf16.msra.mxu0 %v476
        %500 = vmatprep.subr.bf16.mxu0 0
        %501 = vmatpush1.bf16.msra.mxu0 %v477
        %502 = vmatprep.subr.bf16.mxu0 0
        %503 = vmatpush1.bf16.msra.mxu0 0
        %504 = vmatprep.subr.bf16.mxu0 0
        %505 = vmatpush1.bf16.msra.mxu0 0
        %506 = vmatprep.subr.bf16.mxu0 0
        %507 = vmatpush1.bf16.msra.mxu0 0
        %508 = vmatprep.subr.bf16.mxu0 0
        %509 = vmatpush1.bf16.msra.mxu0 0
        %510 = vmatprep.subr.bf16.mxu0 0
        %511 = vmatpush1.bf16.msra.mxu0 0
        %512 = vmatprep.subr.bf16.mxu0 0
        %513 = vmatpush1.bf16.msra.mxu0 0
        %514 = vmatprep.subr.bf16.mxu0 0
        %515 = vmatpush1.bf16.msra.mxu0 0
        %516 = vmatprep.subr.bf16.mxu0 0
        %517 = vmatpush1.bf16.msra.mxu0 0
        %518 = vmatprep.mubr.bf16.mxu0 0
        %519 = vmatmul.mubr.bf16.gmra.mrb[0].mxu0 %v421
        %v520 = vpop.f32.mrb[0].mxu0
        %v521 = vadd.f32 0.0, %v520
        %v522 = vpop.f32.mrb[0].mxu0
        %v523 = vpop.f32.mrb[0].mxu0
        %v524 = vpop.f32.mrb[0].mxu0
        %525 = vdwg.mxu0
        %v526 = vadd.f32 %v420, %v521
        %527 = vst [vmem:[#allocation2] sm:$0xff] %v526
        // Predicated region
        $region57: #{tpu_custom_call.1} parent=39 // pred_check
          %p528 = pneg %p298
        $region58: #{tpu_custom_call.1} parent=39 // pred_check_branch
          %530 = sbr.rel (%p528) target = $region60
        $region59: #{tpu_custom_call.1} parent=39 // pred_region
          %v531 = vld [vmem:[#allocation2] sm:$0xff]
          %v532 = vld [vmem:[%s4] sm:$0x1]
          %v534 = vlaneseq
          %v535 = vshrl.u32 %v534, 7
          %v536 = vsub.s32 0, %v535
          %v537 = vrot.slane %v532, %v536
          %v539 = vadd.f32 %v531, %v537
          %540 = vst [vmem:[%s295] sm:$0xff] %v539
        $region60: #{tpu_custom_call.1} parent=39 // pred_fallthru
          _
        %s541 = sand.u32 %s163, 1
        %s542 = scalar_lea.sflag [#allocation5], %s541
        %s543 = sand.u32 %s163, 1
        %s544 = smul.addr %s543, 8
        %s545 = scalar_lea.vmem [#allocation9], %s544
        // Predicated region
        $region61: #{tpu_custom_call.1} parent=39 // pred_check
          %p546 = pneg %p173
        $region62: #{tpu_custom_call.1} parent=39 // pred_check_branch
          %548 = sbr.rel (%p546) target = $region64
        $region63: #{tpu_custom_call.1} parent=39 // pred_region
          %s550 = ssub.s32 128, 128
          %551 = vsyncadd %s542, %s550
          %s552 = smul.addr %s27, 128
          %s553 = scalar_lea.hbm %s5, %s552
          %s555 = sshll.u32 %s545, 4
          %s556 = int_to_ptr.vmem [resolvable:$true] %s555
          %558 = dma.vmem_to_hbm [thread:$0]  %s556, 128, %s553, %s542
        $region64: #{tpu_custom_call.1} parent=39 // pred_fallthru
          _
      $region40: #{tpu_custom_call.1} parent=5 // pred_fallthru
        _
      %p559 = scmp.le.s32.totalorder 2, %s18
      // Predicated region
      $region65: #{tpu_custom_call.1} parent=5 // pred_check
        %p560 = pneg %p559
      $region66: #{tpu_custom_call.1} parent=5 // pred_check_branch
        %562 = sbr.rel (%p560) target = $region68
      $region67: #{tpu_custom_call.1} parent=5 // pred_region
        %s563 = ssub.s32 %s18, 2
        // Predicated region
        $region69: #{tpu_custom_call.1} parent=67 // pred_check
          %p564 = pneg %p179
        $region70: #{tpu_custom_call.1} parent=67 // pred_check_branch
          %566 = sbr.rel (%p564) target = $region72
        $region71: #{tpu_custom_call.1} parent=67 // pred_region
          %s567 = sand.u32 %s164, 1
          %s568 = scalar_lea.sflag [#allocation5], %s567
          %s569 = sand.u32 %s164, 1
          %s570 = smul.addr %s569, 8
          %s571 = scalar_lea.vmem [#allocation9], %s570
          %572 = dma.done %s568, 128
        $region72: #{tpu_custom_call.1} parent=67 // pred_fallthru
          _
      $region68: #{tpu_custom_call.1} parent=5 // pred_fallthru
        _
    $region6: #{tpu_custom_call.1} parent=1 // loop_footer
      %s22 = sadd.s32 1, %s18
    $region7: #{tpu_custom_call.1} parent=1 // loop_footer_branch
      %17 = sbr.rel target = $region3
    $region8: #{tpu_custom_call.1} parent=1 // loop_exit
      _
    %573 = vsyncpa [#allocation4], 1
    %s574 = scalar_lea.sflag [#allocation4], 1
    %575 = vsyncpa %s574, 1
    %576 = vsyncpa [#allocation7], 1
    %577 = vsyncpa [#allocation5], 1
    %s578 = scalar_lea.sflag [#allocation5], 1
    %579 = vsyncpa %s578, 1

</llo_original>
